<compile_context>
chip_gen: v5e
topology: v5e:2x2
jax: 0.10.0
libtpu: 0.0.40
codegen_flags: <defaults>
</compile_context>

<pallas_src>
import functools
import math

import jax
import jax.numpy as jnp
import numpy as np
from jax.experimental import pallas as pl
from jax.experimental.pallas import tpu as pltpu


def _cdiv(a, b):
    return -(-a // b)


def _round_up(a, b):
    return _cdiv(a, b) * b


def _vmem_capacity_bytes():
    try:
        info = pltpu.get_tpu_info()
        cap = getattr(info, "vmem_capacity_bytes", None)
        if cap:
            return int(cap)
    except Exception:
        pass
    return 64 * 1024 * 1024  # conservative fallback (v7x per-TC VMEM)


# --------------------------------------------------------------------------
# Kernel A (general): lane-packed rows, group reductions via one-hot matmuls.
# --------------------------------------------------------------------------
def _gn_onehot_kernel(x_ref, b_ref, oh_ref, ohtg_ref, o_ref, *, inv_cg, eps):
    x_in = x_ref[...]                                   # (tm, Wp), input dtype
    # LHS stays in the input dtype when it's bf16 (review: v7x MXU), else f32.
    xl = x_in if x_in.dtype == oh_ref.dtype else x_in.astype(oh_ref.dtype)

    oh = oh_ref[...]                                    # (Wp, kG) 0/1 map
    # Fused group reductions through the MXU, f32 accumulation.
    s1 = jnp.dot(xl, oh, preferred_element_type=jnp.float32)        # (tm, kG)
    s2 = jnp.dot(xl * xl, oh, preferred_element_type=jnp.float32)   # (tm, kG)

    mean = s1 * inv_cg
    var = jnp.maximum(s2 * inv_cg - mean * mean, 0.0)   # biased variance
    invstd = jax.lax.rsqrt(var + eps)

    # gamma is pre-folded into the transposed one-hot (f32): one broadcast
    # matmul gives per-channel scale, another the per-channel mean*scale.
    ohtg = ohtg_ref[...]                                # (kG, Wp) f32
    scale = jnp.dot(invstd, ohtg, preferred_element_type=jnp.float32)          # (tm, Wp)
    shift = b_ref[...] - jnp.dot(mean * invstd, ohtg,
                                 preferred_element_type=jnp.float32)           # (tm, Wp)

    x_f32 = x_in.astype(jnp.float32)
    o_ref[...] = (x_f32 * scale + shift).astype(o_ref.dtype)


# --------------------------------------------------------------------------
# Kernel B (fast path, cg % 128 == 0): lane-aligned per-group slices, no MXU.
# --------------------------------------------------------------------------
def _gn_sliced_kernel(x_ref, w_ref, b_ref, o_ref, *, num_groups, cg, eps):
    inv_cg = 1.0 / cg
    x = x_ref[...].astype(jnp.float32)                  # (tm, C)
    w = w_ref[...]                                      # (1, C) f32
    b = b_ref[...]                                      # (1, C) f32
    for g in range(num_groups):                         # static unroll
        lo = g * cg
        xg = x[:, lo:lo + cg]                           # lane-aligned slice
        wg = w[:, lo:lo + cg]
        bg = b[:, lo:lo + cg]
        s1 = jnp.sum(xg, axis=-1, keepdims=True)        # (tm, 1)
        s2 = jnp.sum(xg * xg, axis=-1, keepdims=True)
        mean = s1 * inv_cg
        var = jnp.maximum(s2 * inv_cg - mean * mean, 0.0)
        invstd = jax.lax.rsqrt(var + eps)
        scale = invstd * wg                             # (tm, cg)
        shift = bg - (mean * invstd) * wg
        o_ref[:, lo:lo + cg] = (xg * scale + shift).astype(o_ref.dtype)


# --------------------------------------------------------------------------
# Wrapper
# --------------------------------------------------------------------------
@functools.partial(jax.jit, static_argnames=("num_groups", "eps", "row_tile"))
def group_norm(x, weight, bias, *, num_groups, eps=1e-5, row_tile=None):
    """GroupNorm over the channel dim of x: (B, T, C) -> (B, T, C)."""
    B, T, C = x.shape
    G = int(num_groups)
    assert C % G == 0, "C must be divisible by num_groups"
    cg = C // G
    N = B * T
    eps = float(eps)

    itemsize = jnp.dtype(x.dtype).itemsize
    sub = {4: 8, 2: 16, 1: 32}.get(itemsize, 8)         # sublane tile multiple

    fast_path = (cg % 128 == 0)

    # --- lane packing: k consecutive rows -> one 128-aligned packed row -----
    k = 1 if fast_path else 128 // math.gcd(C, 128)
    Wp = k * C
    kG = k * G

    # Pad only to the k-row packing boundary; for tiny inputs also pad the
    # packed-row count to one minimal sublane tile.  Everything else ragged.
    Np = _cdiv(N, k)
    if Np < sub:
        Np = sub
    N_pack = Np * k

    x2d = x.reshape(N, C)
    if N_pack != N:
        x2d = jnp.pad(x2d, ((0, N_pack - N), (0, 0)))   # zero rows are benign
    xp = x2d.reshape(Np, Wp)

    w_f32 = weight.astype(jnp.float32).reshape(1, C)
    b_f32 = bias.astype(jnp.float32).reshape(1, C)

    lhs_dtype = jnp.bfloat16 if x.dtype == jnp.bfloat16 else jnp.float32
    lhs_itemsize = jnp.dtype(lhs_dtype).itemsize

    # --- VMEM-budgeted row tile ---------------------------------------------
    vmem_cap = _vmem_capacity_bytes()
    if fast_path:
        const_bytes = 2 * 2 * Wp * 4                     # w, b (double-buffered)
    else:
        const_bytes = 2 * (Wp * 4 + Wp * kG * lhs_itemsize + kG * Wp * 4)
    # double-buffered in/out tiles (input dtype) + ~5 full-width f32 temps
    per_row_bytes = Wp * (4 * itemsize + 5 * 4)

    if row_tile is None:
        budget = int(0.40 * vmem_cap) - const_bytes
        rt = max(sub, budget // per_row_bytes)
        # keep a single input DMA at <= ~8 MiB
        rt = min(rt, max(sub, (8 * 1024 * 1024) // (Wp * itemsize)))
    else:
        rt = int(row_tile)
    rt = max(sub, (rt // sub) * sub)
    rt = min(rt, _round_up(Np, sub))                     # don't exceed problem
    if Np > sub:                                         # >= 2 grid steps (v7x 2 TCs)
        rt = min(rt, max(sub, _round_up(_cdiv(Np, 2), sub)))

    grid = (pl.cdiv(Np, rt),)

    footprint = rt * per_row_bytes + const_bytes
    vmem_limit = min(int(0.90 * vmem_cap),
                     max(32 * 1024 * 1024, int(1.4 * footprint) + (1 << 20)))

    if fast_path:
        kernel = functools.partial(_gn_sliced_kernel, num_groups=G, cg=cg, eps=eps)
        in_specs = [
            pl.BlockSpec((rt, Wp), lambda i: (i, 0)),
            pl.BlockSpec((1, Wp), lambda i: (0, 0)),
            pl.BlockSpec((1, Wp), lambda i: (0, 0)),
        ]
        args = (xp, w_f32, b_f32)
    else:
        # Static block-diagonal 0/1 one-hot: packed column j -> virtual group
        # (j // C) * G + (j % C) // cg.  Built in numpy at trace time.
        cols = np.arange(Wp)
        gid = (cols // C) * G + (cols % C) // cg
        oh_np = (gid[:, None] == np.arange(kG)[None, :]).astype(np.float32)
        oh = jnp.asarray(oh_np, dtype=lhs_dtype)                    # exact 0/1 in bf16
        oht = jnp.asarray(np.ascontiguousarray(oh_np.T))            # (kG, Wp) f32
        ohtg = oht * jnp.tile(w_f32, (1, k))                        # gamma folded, f32
        b_p = jnp.tile(b_f32, (1, k))                               # (1, Wp) f32
        kernel = functools.partial(_gn_onehot_kernel, inv_cg=1.0 / cg, eps=eps)
        in_specs = [
            pl.BlockSpec((rt, Wp), lambda i: (i, 0)),
            pl.BlockSpec((1, Wp), lambda i: (0, 0)),
            pl.BlockSpec((Wp, kG), lambda i: (0, 0)),
            pl.BlockSpec((kG, Wp), lambda i: (0, 0)),
        ]
        args = (xp, b_p, oh, ohtg)

    out = pl.pallas_call(
        kernel,
        out_shape=jax.ShapeDtypeStruct((Np, Wp), x.dtype),
        grid_spec=pltpu.PrefetchScalarGridSpec(
            num_scalar_prefetch=0,
            grid=grid,
            in_specs=in_specs,
            out_specs=pl.BlockSpec((rt, Wp), lambda i: (i, 0)),
        ),
        compiler_params=pltpu.CompilerParams(
            dimension_semantics=("parallel",),
            vmem_limit_bytes=int(vmem_limit),
        ),
    )(*args)

    out2d = out.reshape(N_pack, C)
    if N_pack != N:
        out2d = out2d[:N]
    return out2d.reshape(B, T, C)


def _reference(x, weight, bias, *, num_groups, eps=1e-5):
    B, T, C = x.shape
    cg = C // num_groups
    xg = x.reshape(B * T, num_groups, cg).astype(jnp.float32)
    mean = jnp.mean(xg, axis=-1, keepdims=True)
    var = jnp.mean((xg - mean) ** 2, axis=-1, keepdims=True)
    xn = ((xg - mean) / jnp.sqrt(var + eps)).reshape(B * T, C)
    out = xn * weight.reshape(1, C).astype(jnp.float32) + bias.reshape(1, C).astype(jnp.float32)
    return out.reshape(B, T, C).astype(x.dtype)


if __name__ == "__main__":
    key = jax.random.PRNGKey(0)
    k1, k2 = jax.random.split(key)

    # 1) small-C config (one-hot MXU path), f32
    B, T, C, G = 2, 8, 32, 4
    x = jax.random.normal(k1, (B, T, C), dtype=jnp.float32)
    weight = jnp.ones((C,), jnp.float32) + 0.01 * jnp.arange(C, dtype=jnp.float32)
    bias = 0.05 * jnp.arange(C, dtype=jnp.float32)
    out = jax.block_until_ready(group_norm(x, weight, bias, num_groups=G, eps=1e-5))
    ref = _reference(x, weight, bias, num_groups=G, eps=1e-5)
    assert out.shape == (B, T, C)
    assert jnp.allclose(out, ref, atol=1e-4, rtol=1e-4), float(jnp.max(jnp.abs(out - ref)))

    # 2) same config in bf16 (bf16 one-hot / bf16 matmul LHS path)
    xb = x.astype(jnp.bfloat16)
    outb = jax.block_until_ready(group_norm(xb, weight, bias, num_groups=G, eps=1e-5))
    refb = _reference(xb, weight, bias, num_groups=G, eps=1e-5)
    db = jnp.max(jnp.abs(outb.astype(jnp.float32) - refb.astype(jnp.float32)))
    assert jnp.allclose(outb.astype(jnp.float32), refb.astype(jnp.float32),
                        atol=1e-1, rtol=1e-1), float(db)

    # 3) cg % 128 == 0 config (lane-aligned fast path, no matmuls)
    Bf, Tf, Cf, Gf = 2, 8, 256, 2
    xf = jax.random.normal(k2, (Bf, Tf, Cf), dtype=jnp.float32)
    wf = jnp.ones((Cf,), jnp.float32) + 0.01 * jnp.arange(Cf, dtype=jnp.float32)
    bf = 0.05 * jnp.arange(Cf, dtype=jnp.float32)
    outf = jax.block_until_ready(group_norm(xf, wf, bf, num_groups=Gf, eps=1e-5))
    reff = _reference(xf, wf, bf, num_groups=Gf, eps=1e-5)
    assert jnp.allclose(outf, reff, atol=1e-4, rtol=1e-4), float(jnp.max(jnp.abs(outf - reff)))

    print("KERNEL_OK")
</pallas_src>

<mosaic_0001>
module attributes {stable_mosaic.version = 11 : i64} {
  func.func @_gn_onehot_kernel(%arg0: i32, %arg1: memref<8x128xf32, #tpu.memory_space<vmem>>, %arg2: memref<1x128xf32, #tpu.memory_space<vmem>>, %arg3: memref<128x16xf32, #tpu.memory_space<vmem>>, %arg4: memref<16x128xf32, #tpu.memory_space<vmem>>, %arg5: memref<8x128xf32, #tpu.memory_space<vmem>>) attributes {dimension_semantics = [#tpu.dimension_semantics<parallel>], iteration_bounds = array<i64: 1>, scalar_prefetch = 0 : i64, scratch_operands = 0 : i64, tpu.core_type = #tpu.core_type<tc>, window_params = [{transform_indices = @transform_0, window_bounds = array<i64: 8, 128>}, {pipeline_mode = #tpu.pipeline_mode<synchronous>, transform_indices = @transform_1, window_bounds = array<i64: 1, 128>}, {pipeline_mode = #tpu.pipeline_mode<synchronous>, transform_indices = @transform_2, window_bounds = array<i64: 128, 16>}, {pipeline_mode = #tpu.pipeline_mode<synchronous>, transform_indices = @transform_3, window_bounds = array<i64: 16, 128>}, {transform_indices = @transform_4, window_bounds = array<i64: 8, 128>}]} {
    %c0 = arith.constant 0 : index
    %c0_0 = arith.constant 0 : index
    %0 = vector.load %arg1[%c0, %c0_0] : memref<8x128xf32, #tpu.memory_space<vmem>>, vector<8x128xf32>
    %c0_1 = arith.constant 0 : index
    %c0_2 = arith.constant 0 : index
    %1 = vector.load %arg3[%c0_1, %c0_2] : memref<128x16xf32, #tpu.memory_space<vmem>>, vector<128x16xf32>
    %cst = arith.constant dense<0.000000e+00> : vector<8x16xf32>
    %2 = tpu.matmul %0, %1, %cst {dimension_numbers = #tpu.dot_dimension_numbers<[1], [0], [0], [1], [0, 0, 1, 1], [], []>} : vector<8x128xf32>, vector<128x16xf32>, vector<8x16xf32> -> vector<8x16xf32>
    %3 = arith.mulf %0, %0 : vector<8x128xf32>
    %cst_3 = arith.constant dense<0.000000e+00> : vector<8x16xf32>
    %4 = tpu.matmul %3, %1, %cst_3 {dimension_numbers = #tpu.dot_dimension_numbers<[1], [0], [0], [1], [0, 0, 1, 1], [], []>} : vector<8x128xf32>, vector<128x16xf32>, vector<8x16xf32> -> vector<8x16xf32>
    %cst_4 = arith.constant 1.250000e-01 : f32
    %5 = vector.broadcast %cst_4 : f32 to vector<8x16xf32>
    %6 = arith.mulf %2, %5 : vector<8x16xf32>
    %cst_5 = arith.constant 1.250000e-01 : f32
    %7 = vector.broadcast %cst_5 : f32 to vector<8x16xf32>
    %8 = arith.mulf %4, %7 : vector<8x16xf32>
    %9 = arith.mulf %6, %6 : vector<8x16xf32>
    %10 = arith.subf %8, %9 : vector<8x16xf32>
    %cst_6 = arith.constant 0.000000e+00 : f32
    %11 = vector.broadcast %cst_6 : f32 to vector<8x16xf32>
    %12 = arith.maximumf %10, %11 : vector<8x16xf32>
    %cst_7 = arith.constant 9.99999974E-6 : f32
    %13 = vector.broadcast %cst_7 : f32 to vector<8x16xf32>
    %14 = arith.addf %12, %13 : vector<8x16xf32>
    %15 = math.rsqrt %14 : vector<8x16xf32>
    %c0_8 = arith.constant 0 : index
    %c0_9 = arith.constant 0 : index
    %16 = vector.load %arg4[%c0_8, %c0_9] : memref<16x128xf32, #tpu.memory_space<vmem>>, vector<16x128xf32>
    %cst_10 = arith.constant dense<0.000000e+00> : vector<8x128xf32>
    %17 = tpu.matmul %15, %16, %cst_10 {dimension_numbers = #tpu.dot_dimension_numbers<[1], [0], [0], [1], [0, 0, 1, 1], [], []>} : vector<8x16xf32>, vector<16x128xf32>, vector<8x128xf32> -> vector<8x128xf32>
    %c0_11 = arith.constant 0 : index
    %c0_12 = arith.constant 0 : index
    %18 = vector.load %arg2[%c0_11, %c0_12] : memref<1x128xf32, #tpu.memory_space<vmem>>, vector<1x128xf32>
    %19 = arith.mulf %6, %15 : vector<8x16xf32>
    %cst_13 = arith.constant dense<0.000000e+00> : vector<8x128xf32>
    %20 = tpu.matmul %19, %16, %cst_13 {dimension_numbers = #tpu.dot_dimension_numbers<[1], [0], [0], [1], [0, 0, 1, 1], [], []>} : vector<8x16xf32>, vector<16x128xf32>, vector<8x128xf32> -> vector<8x128xf32>
    %21 = vector.broadcast %18 : vector<1x128xf32> to vector<8x128xf32>
    %22 = arith.subf %21, %20 : vector<8x128xf32>
    %23 = arith.mulf %0, %17 : vector<8x128xf32>
    %24 = arith.addf %23, %22 : vector<8x128xf32>
    %c0_14 = arith.constant 0 : index
    %c0_15 = arith.constant 0 : index
    %25 = vector.load %arg5[%c0_14, %c0_15] : memref<8x128xf32, #tpu.memory_space<vmem>>, vector<8x128xf32>
    tpu.vector_store %arg5[%c0_14, %c0_15], %24 {strides = array<i32>} : memref<8x128xf32, #tpu.memory_space<vmem>>, vector<8x128xf32>,
    return
  }
  func.func @transform_0(%arg0: i32) -> (i32, i32) {
    %c0_i32 = arith.constant 0 : i32
    %c0_i32_0 = arith.constant 0 : i32
    return %arg0, %c0_i32 : i32, i32
  }
  func.func @transform_1(%arg0: i32) -> (i32, i32) {
    %c0_i32 = arith.constant 0 : i32
    %c0_i32_0 = arith.constant 0 : i32
    %c0_i32_1 = arith.constant 0 : i32
    return %c0_i32, %c0_i32_0 : i32, i32
  }
  func.func @transform_2(%arg0: i32) -> (i32, i32) {
    %c0_i32 = arith.constant 0 : i32
    %c0_i32_0 = arith.constant 0 : i32
    %c0_i32_1 = arith.constant 0 : i32
    return %c0_i32, %c0_i32_0 : i32, i32
  }
  func.func @transform_3(%arg0: i32) -> (i32, i32) {
    %c0_i32 = arith.constant 0 : i32
    %c0_i32_0 = arith.constant 0 : i32
    %c0_i32_1 = arith.constant 0 : i32
    return %c0_i32, %c0_i32_0 : i32, i32
  }
  func.func @transform_4(%arg0: i32) -> (i32, i32) {
    %c0_i32 = arith.constant 0 : i32
    %c0_i32_0 = arith.constant 0 : i32
    return %arg0, %c0_i32 : i32, i32
  }
}

</mosaic_0001>

<llo_original>
// kernel: group_norm.1
$region0: #{group_norm.1}
  #allocation0 [shape = 'u32[]', space=smem, size = 0x4, offset = 0x4, fixed_abs, tag = 'smem constant byte address 0x4 - core index']
  #allocation1 [shape = 'u32[72,128]{1,0:T(1,128)}', space=vmem, size = 0x9000, scoped, tag = 'internal scratch']
  %s0 = inlined_call_operand.vmem [shape: f32[8,128], index: 0, kind: input, shape index: {}]
  %s1 = inlined_call_operand.vmem [shape: f32[1,128], index: 1, kind: input, shape index: {}]
  %s2 = inlined_call_operand.hbm [shape: f32[128,16], index: 2, kind: input, shape index: {}]
  %s3 = inlined_call_operand.vmem [shape: f32[16,128], index: 3, kind: input, shape index: {}]
  %s4 = inlined_call_operand.vmem [shape: f32[8,128], index: 4, kind: output, shape index: {}]
  %s5 = sld [smem:[#allocation0]]
  $region30: #{group_norm.1} parent=0
    _
  %s7 = ssub.s32 1, %s5
  %s8 = scalar_select 0, %s7, %s5
  $region1: #{group_norm.1} parent=0
    #allocation2 [shape = 'u8[65536]{0}', space=vmem, size = 0x10000, scoped, tag = 'input window, operand 2, single buffered']
    #allocation3 [shape = 's32[1]{0}', space=sflag, size = 0x4, scoped, tag = 'scoped memory for group_norm.1']
    %9 = vsyncpa [#allocation3], 0
    // Predicated region
    $region2: #{group_norm.1} parent=1 // pred_check
      _
    $region3: #{group_norm.1} parent=1 // pred_check_branch
      %11 = sbr.rel (0) target = $region5
    $region4: #{group_norm.1} parent=1 // pred_region
      _
    $region5: #{group_norm.1} parent=1 // pred_fallthru
      _
    // Predicated region
    $region6: #{group_norm.1} parent=1 // pred_check
      _
    $region7: #{group_norm.1} parent=1 // pred_check_branch
      %13 = sbr.rel (0) target = $region9
    $region8: #{group_norm.1} parent=1 // pred_region
      _
    $region9: #{group_norm.1} parent=1 // pred_fallthru
      _
    // Predicated region
    $region10: #{group_norm.1} parent=1 // pred_check
      _
    $region11: #{group_norm.1} parent=1 // pred_check_branch
      %15 = sbr.rel (0) target = $region13
    $region12: #{group_norm.1} parent=1 // pred_region
      %17 = vsyncadd [#allocation3], 0
      %s18 = sshll.u32 %s2, 4
      %s19 = int_to_ptr.hbm [resolvable:$true] %s18
      %s20 = sshll.u32 [#allocation2], 4
      %s21 = int_to_ptr.vmem [resolvable:$true] %s20
      %26 = dma.hbm_to_vmem [thread:$0]  %s19, 2048, %s21, [#allocation3], 128, 128, 8
    $region13: #{group_norm.1} parent=1 // pred_fallthru
      _
    // Predicated region
    $region14: #{group_norm.1} parent=1 // pred_check
      _
    $region15: #{group_norm.1} parent=1 // pred_check_branch
      %28 = sbr.rel (0) target = $region17
    $region16: #{group_norm.1} parent=1 // pred_region
      _
    $region17: #{group_norm.1} parent=1 // pred_fallthru
      _
    // Predicated region
    $region18: #{group_norm.1} parent=1 // pred_check
      _
    $region19: #{group_norm.1} parent=1 // pred_check_branch
      %30 = sbr.rel (0) target = $region21
    $region20: #{group_norm.1} parent=1 // pred_region
      %32 = dma.done [#allocation3], 2048
    $region21: #{group_norm.1} parent=1 // pred_fallthru
      _
    %v33 = vld [vmem:[%s0] sm:$0xff]
    %v34 = vld [vmem:[#allocation2] sm:$0xff]
    %v35 = vld [vmem:[#allocation2 + $0x8] sm:$0xff]
    %v36 = vld [vmem:[#allocation2 + $0x10] sm:$0xff]
    %v37 = vld [vmem:[#allocation2 + $0x18] sm:$0xff]
    %v38 = vld [vmem:[#allocation2 + $0x20] sm:$0xff]
    %v39 = vld [vmem:[#allocation2 + $0x28] sm:$0xff]
    %v40 = vld [vmem:[#allocation2 + $0x30] sm:$0xff]
    %v41 = vld [vmem:[#allocation2 + $0x38] sm:$0xff]
    %v42 = vld [vmem:[#allocation2 + $0x40] sm:$0xff]
    %v43 = vld [vmem:[#allocation2 + $0x48] sm:$0xff]
    %v44 = vld [vmem:[#allocation2 + $0x50] sm:$0xff]
    %v45 = vld [vmem:[#allocation2 + $0x58] sm:$0xff]
    %v46 = vld [vmem:[#allocation2 + $0x60] sm:$0xff]
    %v47 = vld [vmem:[#allocation2 + $0x68] sm:$0xff]
    %v48 = vld [vmem:[#allocation2 + $0x70] sm:$0xff]
    %v49 = vld [vmem:[#allocation2 + $0x78] sm:$0xff]
    %50 = vmatpush.msra.mxu0 %v49
    %51 = vmatpush.msra.mxu0 %v48
    %52 = vmatpush.msra.mxu0 %v47
    %53 = vmatpush.msra.mxu0 %v46
    %54 = vmatpush.msra.mxu0 %v45
    %55 = vmatpush.msra.mxu0 %v44
    %56 = vmatpush.msra.mxu0 %v43
    %57 = vmatpush.msra.mxu0 %v42
    %58 = vmatpush.msra.mxu0 %v41
    %59 = vmatpush.msra.mxu0 %v40
    %60 = vmatpush.msra.mxu0 %v39
    %61 = vmatpush.msra.mxu0 %v38
    %62 = vmatpush.msra.mxu0 %v37
    %63 = vmatpush.msra.mxu0 %v36
    %64 = vmatpush.msra.mxu0 %v35
    %65 = vmatpush.msra.mxu0 %v34
    %66 = vmatmul.f32.gmra.mxu0 %v33
    %v67 = vpop.f32.mrf.mxu0
    %v68 = vadd.f32 0.0, %v67
    %69 = vdwg.mxu0
    %v70 = vmul.f32 %v33, %v33
    %71 = vmatpush.msra.mxu0 %v49
    %72 = vmatpush.msra.mxu0 %v48
    %73 = vmatpush.msra.mxu0 %v47
    %74 = vmatpush.msra.mxu0 %v46
    %75 = vmatpush.msra.mxu0 %v45
    %76 = vmatpush.msra.mxu0 %v44
    %77 = vmatpush.msra.mxu0 %v43
    %78 = vmatpush.msra.mxu0 %v42
    %79 = vmatpush.msra.mxu0 %v41
    %80 = vmatpush.msra.mxu0 %v40
    %81 = vmatpush.msra.mxu0 %v39
    %82 = vmatpush.msra.mxu0 %v38
    %83 = vmatpush.msra.mxu0 %v37
    %84 = vmatpush.msra.mxu0 %v36
    %85 = vmatpush.msra.mxu0 %v35
    %86 = vmatpush.msra.mxu0 %v34
    %87 = vmatmul.f32.gmra.mxu0 %v70
    %v88 = vpop.f32.mrf.mxu0
    %v89 = vadd.f32 0.0, %v88
    %90 = vdwg.mxu0
    %v91 = vmul.f32 %v68, 0.125
    %v92 = vmul.f32 %v89, 0.125
    %v93 = vmul.f32 %v91, %v91
    %v94 = vsub.f32 %v92, %v93
    %v95 = vmax.f32 %v94, 0.0
    %v96 = vadd.f32 %v95, 1e-05
    %v97 = vrsqrt.pop %v96
    %v98 = vmul.f32 %v97, %v96
    %v99 = vmul.f32 %v98, %v97
    %v100 = vmul.f32 0.5, %v99
    %v101 = vsub.f32 1.5, %v100
    %v102 = vmul.f32 %v97, %v101
    %vm103 = vweird.f32 %v96
    %vm104 = vweird.f32 %v97
    %vm105 = vmor %vm103, %vm104
    %v106 = vsel %vm105, %v97, %v102
    %v107 = vld [vmem:[%s3] sm:$0xff]
    %v108 = vld [vmem:[%s3 + $0x8] sm:$0xff]
    %vm109 = vcmask 130048
    %v111 = vsel %vm109, %v106, 0
    %113 = vmatpush.msra.mxu0 0.0
    %114 = vmatpush.msra.mxu0 0.0
    %115 = vmatpush.msra.mxu0 0.0
    %116 = vmatpush.msra.mxu0 0.0
    %117 = vmatpush.msra.mxu0 0.0
    %118 = vmatpush.msra.mxu0 0.0
    %119 = vmatpush.msra.mxu0 0.0
    %120 = vmatpush.msra.mxu0 0.0
    %121 = vmatpush.msra.mxu0 0.0
    %122 = vmatpush.msra.mxu0 0.0
    %123 = vmatpush.msra.mxu0 0.0
    %124 = vmatpush.msra.mxu0 0.0
    %125 = vmatpush.msra.mxu0 0.0
    %126 = vmatpush.msra.mxu0 0.0
    %127 = vmatpush.msra.mxu0 %v108
    %128 = vmatpush.msra.mxu0 %v107
    %129 = vmatmul.f32.gmra.mxu0 %v111
    %v130 = vpop.f32.mrf.mxu0
    %v131 = vadd.f32 0.0, %v130
    %132 = vdwg.mxu0
    %v133 = vld [vmem:[%s1] sm:$0x1]
    %v134 = vmul.f32 %v91, %v106
    %v136 = vsel %vm109, %v134, 0
    %138 = vmatpush.msra.mxu0 0.0
    %139 = vmatpush.msra.mxu0 0.0
    %140 = vmatpush.msra.mxu0 0.0
    %141 = vmatpush.msra.mxu0 0.0
    %142 = vmatpush.msra.mxu0 0.0
    %143 = vmatpush.msra.mxu0 0.0
    %144 = vmatpush.msra.mxu0 0.0
    %145 = vmatpush.msra.mxu0 0.0
    %146 = vmatpush.msra.mxu0 0.0
    %147 = vmatpush.msra.mxu0 0.0
    %148 = vmatpush.msra.mxu0 0.0
    %149 = vmatpush.msra.mxu0 0.0
    %150 = vmatpush.msra.mxu0 0.0
    %151 = vmatpush.msra.mxu0 0.0
    %152 = vmatpush.msra.mxu0 %v108
    %153 = vmatpush.msra.mxu0 %v107
    %154 = vmatmul.f32.gmra.mxu0 %v136
    %v155 = vpop.f32.mrf.mxu0
    %v156 = vadd.f32 0.0, %v155
    %157 = vdwg.mxu0
    %v159 = vperm.slane %v133, 0
    %v161 = vsub.f32 %v159, %v156
    %v162 = vmul.f32 %v33, %v131
    %v163 = vadd.f32 %v162, %v161
    %164 = vst [vmem:[%s4] sm:$0xff] %v163
    // Predicated region
    $region22: #{group_norm.1} parent=1 // pred_check
      _
    $region23: #{group_norm.1} parent=1 // pred_check_branch
      %166 = sbr.rel (0) target = $region25
    $region24: #{group_norm.1} parent=1 // pred_region
      _
    $region25: #{group_norm.1} parent=1 // pred_fallthru
      _
    // Predicated region
    $region26: #{group_norm.1} parent=1 // pred_check
      _
    $region27: #{group_norm.1} parent=1 // pred_check_branch
      %168 = sbr.rel (0) target = $region29
    $region28: #{group_norm.1} parent=1 // pred_region
      _
    $region29: #{group_norm.1} parent=1 // pred_fallthru
      _
    %169 = vsyncpa [#allocation3], 1

</llo_original>
